<compile_context>
chip_gen: v5e
topology: v5e:2x2
jax: 0.10.0
libtpu: 0.0.40
codegen_flags: <defaults>
</compile_context>

<pallas_src>
from math import sqrt

import jax
import jax.numpy as jnp
from jax.experimental import pallas as pl
from jax.experimental.pallas import tpu as pltpu


def _round_up(v, m):
    return ((v + m - 1) // m) * m


def _vmem_limit_bytes():
    """Generation-aware VMEM limit with headroom for Mosaic internal scratch.
    v7x (64 MiB physical) -> ~48 MiB; v5e/v6e (128 MiB) -> ~108 MiB."""
    phys = 64 * 1024 * 1024            # conservative default if the query fails
    try:
        info = pltpu.get_tpu_info()
        phys = int(getattr(info, "vmem_capacity_bytes", phys))
    except Exception:
        pass
    return max(32 * 1024 * 1024,
               min(phys - 16 * 1024 * 1024, int(phys * 0.85)))


def _pick_query_tile(S):
    """Return (tq, Sp): query-tile size and padded sequence length (Sp % tq == 0)."""
    if S <= 1024:
        return S, S
    for cand in (512, 256, 128):        # prefer 256-aligned MXU M dims (v6e/v7x)
        if S % cand == 0:
            return cand, S
    # Non-divisor long S: pad to a tile multiple instead of a full (S,S) block.
    return 256, _round_up(S, 256)


def _vmem_estimate(bt, tq, sp, E, d, dp, itemsize, has_mask, mask_2d, use_scratch):
    """Per-step VMEM estimate: pipelined blocks + persistent scratch + live f32 values."""
    f32 = 4
    est = 2 * bt * sp * E * itemsize                       # x block (double-buffered)
    est += 2 * (E * dp + E * 2 * dp + 3 * dp) * f32        # weights + biases (x2 bufs)
    est += 2 * bt * tq * d * itemsize                      # output block
    if has_mask:
        est += 2 * (tq if mask_2d else bt * tq) * sp       # int8 mask block
    if use_scratch:
        est += bt * sp * 2 * dp * f32                      # persistent projected K|V
    # live in-kernel f32 intermediates: x_kv, kv, q, scores + exp, out
    est += f32 * bt * (sp * E + sp * 2 * dp + tq * dp + 2 * tq * sp + tq * dp)
    return est


def _pick_batch_block(B, sp, E, d, dp, tq, itemsize, has_mask, mask_2d,
                      use_scratch, budget):
    """Largest batch block that fits `budget`, keeps >= 2 batch blocks when
    B >= 2 (v7x megacore), and keeps in-kernel reshapes layout-free.
    Returns None when even bt = 1 does not fit."""
    def fits(bt):
        return _vmem_estimate(bt, tq, sp, E, d, dp, itemsize, has_mask,
                              mask_2d, use_scratch) <= budget

    if not fits(1):
        return None
    cap = B if B < 2 else max(1, B // 2)     # nb >= 2 so the 2 v7x cores can split
    best, best_aligned = 1, 0
    for cand in range(1, cap + 1):
        if B % cand:
            continue
        if cand > 1 and (sp % 8 or tq % 8):
            continue                          # keep (bt, rows, E)->(bt*rows, E) layout-free
        if not fits(cand):
            continue
        best = max(best, cand)
        if (cand * sp) % 256 == 0:            # fill the 256-wide MXU (v6e/v7x)
            best_aligned = max(best_aligned, cand)
    if best_aligned and 2 * best_aligned >= best:
        return best_aligned
    return best


def _pick_tiling(B, S, E, d, dp, itemsize, has_mask, mask_2d, budget):
    tq, sp = _pick_query_tile(S)
    while True:
        use_scratch = sp // tq > 1
        bt = _pick_batch_block(B, sp, E, d, dp, tq, itemsize, has_mask,
                               mask_2d, use_scratch, budget)
        if bt is not None:
            return tq, sp, bt
        smaller = [t for t in (512, 256, 128) if t < tq]
        if not smaller:
            # TODO(synk): a flash-style KV grid axis (online softmax) is needed
            # once the full-S x block / projected K|V no longer fits VMEM.
            return tq, sp, 1
        tq = smaller[0]
        sp = _round_up(S, tq)


def _attention_body(xkv_ref, wq_ref, wkv_ref, bq_ref, bkv_ref, m_ref, o_ref,
                    kv_scr, *, d, dp, s_true, tq, n_q):
    bt, sp, _ = xkv_ref.shape

    def _flat(blk):                      # (bt, rows, c) -> (bt*rows, c)
        nb, nr, nc = blk.shape
        return blk[0] if nb == 1 else blk.reshape(nb * nr, nc)

    def _project_kv():
        x_kv = _flat(xkv_ref[...])
        kv = jnp.dot(x_kv, wkv_ref[...],
                     preferred_element_type=jnp.float32) + bkv_ref[...]
        return kv.reshape(bt, sp, 2 * dp)

    # --- K/V projection: once per batch block, reused across query tiles ----
    if kv_scr is None:                   # single query tile: no scratch needed
        kv = _project_kv()
        k = kv[:, :, :dp]
        v = kv[:, :, dp:]
    else:
        @pl.when(pl.program_id(1) == 0)
        def _():
            kv_scr[...] = _project_kv()
        k = kv_scr[:, :, :dp]            # lane-aligned static slices (dp % 128 == 0)
        v = kv_scr[:, :, dp:]

    # --- Q projection: slice query rows from the resident x block -----------
    if n_q == 1:
        xq_blk = xkv_ref[...]
    else:
        start = pl.multiple_of(pl.program_id(1) * tq, tq)
        xq_blk = xkv_ref[:, pl.ds(start, tq), :]
    x_q = _flat(xq_blk)
    # 1/sqrt(d) is pre-folded into wq/bq in the wrapper.
    q = jnp.dot(x_q, wq_ref[...], preferred_element_type=jnp.float32) + bq_ref[...]
    q = q.reshape(bt, tq, dp)

    # --- scores: contract the last dims (no in-kernel K transpose) ----------
    a = jnp.einsum('bqd,bkd->bqk', q, k, preferred_element_type=jnp.float32)

    if sp != s_true:                     # key-padding columns (non-divisor S)
        col = jax.lax.broadcasted_iota(jnp.int32, a.shape, 2)
        a = jnp.where(col >= s_true, -jnp.inf, a)
    if m_ref is not None:                # nonzero entries are masked
        a = jnp.where(m_ref[...] != 0, -jnp.inf, a)

    # --- softmax with deferred normalization --------------------------------
    a = a - jnp.max(a, axis=-1, keepdims=True)
    p = jnp.exp(a)
    denom = jnp.sum(p, axis=-1, keepdims=True)
    out = jnp.einsum('bqk,bkd->bqd', p, v, preferred_element_type=jnp.float32)
    # Exact divide (pl.reciprocal(approx=True) breaks 1e-5 parity); a (tq,1)
    # divide + (tq,dp) multiply replaces the reference's (tq,S) divide.
    out = out * (1.0 / denom)
    if m_ref is not None:
        # Fully-masked rows: denom is NaN -> row flushes to 0 (reference semantics).
        out = jnp.nan_to_num(out, nan=0.0, posinf=1.0, neginf=0.0)
    o_ref[...] = out[:, :, :d].astype(o_ref.dtype)   # unpadded (bt, tq, d) store


def attention_forward(x, w_q, b_q, w_k, b_k, w_v, b_v, mask=None):
    """x: [B, S, E].  w_*: [d, E] (PyTorch Linear layout).  b_*: [d].
    mask: None, [S, S], [B, S, S] or [B, 1, S, S]; nonzero entries are masked."""
    B, S, E = x.shape
    d = w_q.shape[0]
    scale = 1.0 / sqrt(max(d, 1))
    dp = _round_up(max(d, 1), 128)
    pad = dp - d
    has_mask = mask is not None

    # --- wrapper-side glue: transpose, zero-pad, fuse K|V, fold scale into Q -
    def padw(w):                                    # (d, E) -> (E, dp)
        return jnp.pad(w.T, ((0, 0), (0, pad)))

    wq_p = padw(w_q) * scale                                         # (E, dp)
    wkv_p = jnp.concatenate([padw(w_k), padw(w_v)], axis=1)          # (E, 2*dp)
    bq_p = (jnp.pad(b_q, (0, pad)) * scale).reshape(1, dp)
    bkv_p = jnp.concatenate([jnp.pad(b_k, (0, pad)),
                             jnp.pad(b_v, (0, pad))]).reshape(1, 2 * dp)

    mask_2d = False
    if has_mask:
        if mask.ndim == 4:                          # [B, 1, S, S] -> [B, S, S]
            mask = mask[:, 0]
        mask_2d = mask.ndim == 2                    # keep [S, S]: B x less HBM

    # --- tiling ---------------------------------------------------------------
    vmem_limit = _vmem_limit_bytes()
    budget = int(vmem_limit * 0.45)                 # ~21 MiB v7x, ~48 MiB v5e/v6e
    tq, sp, bt = _pick_tiling(B, S, E, d, dp, x.dtype.itemsize,
                              has_mask, mask_2d, budget)
    n_q = sp // tq
    nb = B // bt
    use_scratch = n_q > 1
    pad_s = sp - S

    x_p = jnp.pad(x, ((0, 0), (0, pad_s), (0, 0))) if pad_s else x
    mask_i8 = None
    if has_mask:
        mask_i8 = mask.astype(jnp.int8)             # 4x less HBM than int32
        if pad_s:
            widths = ((0, pad_s), (0, pad_s)) if mask_2d \
                else ((0, 0), (0, pad_s), (0, pad_s))
            mask_i8 = jnp.pad(mask_i8, widths)      # padded keys re-masked in-kernel

    # --- specs ----------------------------------------------------------------
    xkv_spec = pl.BlockSpec((bt, sp, E), lambda b, q: (b, 0, 0))
    wq_spec = pl.BlockSpec((E, dp), lambda b, q: (0, 0))
    wkv_spec = pl.BlockSpec((E, 2 * dp), lambda b, q: (0, 0))
    bq_spec = pl.BlockSpec((1, dp), lambda b, q: (0, 0))
    bkv_spec = pl.BlockSpec((1, 2 * dp), lambda b, q: (0, 0))
    # TODO(synk): pipeline_mode=pl.Buffered(1) on the constant weight/bias specs
    # would reclaim their second pipeline buffer; left off until pipeline_mode
    # support in the top-level pallas_call pipeline is confirmed on all gens.
    if mask_2d:
        m_spec = pl.BlockSpec((tq, sp), lambda b, q: (q, 0))
    else:
        m_spec = pl.BlockSpec((bt, tq, sp), lambda b, q: (b, q, 0))
    o_spec = pl.BlockSpec((bt, tq, d), lambda b, q: (b, q, 0))

    in_specs = [xkv_spec, wq_spec, wkv_spec, bq_spec, bkv_spec]
    args = [x_p, wq_p, wkv_p, bq_p, bkv_p]
    if has_mask:
        in_specs.append(m_spec)
        args.append(mask_i8)

    scratch_shapes = []
    if use_scratch:
        # Projected K|V persists across the query tiles of one batch block.
        scratch_shapes.append(pltpu.VMEM((bt, sp, 2 * dp), jnp.float32))

    def kernel(*refs):
        refs = list(refs)
        kv_scr = refs.pop() if use_scratch else None
        o_ref = refs.pop()
        m_ref = refs.pop() if has_mask else None
        xkv_ref, wq_ref, wkv_ref, bq_ref, bkv_ref = refs
        _attention_body(xkv_ref, wq_ref, wkv_ref, bq_ref, bkv_ref, m_ref, o_ref,
                        kv_scr, d=d, dp=dp, s_true=S, tq=tq, n_q=n_q)

    out = pl.pallas_call(
        kernel,
        out_shape=jax.ShapeDtypeStruct((B, sp, d), x.dtype),
        grid_spec=pltpu.PrefetchScalarGridSpec(
            num_scalar_prefetch=0,
            grid=(nb, n_q),
            in_specs=in_specs,
            out_specs=o_spec,
            scratch_shapes=scratch_shapes,
        ),
        compiler_params=pltpu.CompilerParams(
            # batch axis may split across the v7x megacore; the query axis is
            # sequential so the K|V scratch filled at q == 0 can be reused.
            dimension_semantics=("parallel", "arbitrary"),
            vmem_limit_bytes=vmem_limit),
    )(*args)

    return out[:, :S, :] if pad_s else out


def _reference(x, w_q, b_q, w_k, b_k, w_v, b_v, mask=None):
    B, S, _ = x.shape
    d = w_q.shape[0]
    s = 1.0 / sqrt(max(d, 1))
    q = x @ w_q.T + b_q
    k = x @ w_k.T + b_k
    v = x @ w_v.T + b_v
    a = jnp.einsum("bqd,bkd->bqk", q, k) * s
    if mask is not None:
        m = mask.astype(bool)
        if m.ndim == 4:
            m = m[:, 0]
        elif m.ndim == 2:
            m = jnp.broadcast_to(m, (B, S, S))
        a = jnp.where(m, -jnp.inf, a)
    a = a - jnp.max(a, axis=-1, keepdims=True)
    p = jnp.exp(a)
    attn = p / jnp.sum(p, axis=-1, keepdims=True)
    attn = jnp.nan_to_num(attn, nan=0.0, posinf=1.0, neginf=0.0)
    return jnp.einsum("bqk,bkd->bqd", attn, v)


if __name__ == "__main__":
    def make_params(key, d, e):
        kq, kk, kv, kbq, kbk, kbv = jax.random.split(key, 6)
        bound = 1.0 / sqrt(e)
        u = lambda k, shape: jax.random.uniform(k, shape, jnp.float32, -bound, bound)
        # (w_q, b_q, w_k, b_k, w_v, b_v) — mimics nn.Linear's U(-1/sqrt(E), 1/sqrt(E)).
        return (u(kq, (d, e)), u(kbq, (d,)), u(kk, (d, e)), u(kbk, (d,)),
                u(kv, (d, e)), u(kbv, (d,)))

    key = jax.random.PRNGKey(0)
    k_small, k_big = jax.random.split(key)

    # --- small shape: B=2, S=8, E=32, d=16 (single query tile, no scratch) ---
    B, S, E, D = 2, 8, 32, 16
    kx, kp = jax.random.split(k_small)
    x = jax.random.normal(kx, (B, S, E), dtype=jnp.float32)
    params = make_params(kp, D, E)

    out = jax.block_until_ready(attention_forward(x, *params))
    ref = _reference(x, *params)
    assert out.shape == (B, S, D)
    assert jnp.allclose(out, ref, atol=1e-5, rtol=1e-5)

    # 2-D causal mask with one fully-masked row (row -> exact zeros).
    causal = jnp.arange(S)[None, :] > jnp.arange(S)[:, None]
    mask2d = causal.at[3, :].set(True)
    out_m = jax.block_until_ready(attention_forward(x, *params, mask=mask2d))
    ref_m = _reference(x, *params, mask=mask2d)
    assert jnp.allclose(out_m, ref_m, atol=1e-5, rtol=1e-5)

    # 4-D mask [B, 1, S, S] (exercises the squeeze + per-batch mask spec).
    mask4d = jnp.broadcast_to(causal, (B, 1, S, S))
    out_m4 = jax.block_until_ready(attention_forward(x, *params, mask=mask4d))
    ref_m4 = _reference(x, *params, mask=mask4d)
    assert jnp.allclose(out_m4, ref_m4, atol=1e-5, rtol=1e-5)

    # --- larger shape: exercises query tiling + persistent K|V scratch ------
    B2, S2, E2, D2 = 2, 2048, 64, 32
    kx2, kp2 = jax.random.split(k_big)
    x2 = jax.random.normal(kx2, (B2, S2, E2), dtype=jnp.float32)
    params2 = make_params(kp2, D2, E2)
    causal2 = jnp.arange(S2)[None, :] > jnp.arange(S2)[:, None]
    out2 = jax.block_until_ready(attention_forward(x2, *params2, mask=causal2))
    ref2 = _reference(x2, *params2, mask=causal2)
    assert out2.shape == (B2, S2, D2)
    assert jnp.allclose(out2, ref2, atol=1e-4, rtol=1e-4)

    print("KERNEL_OK")
</pallas_src>

<mosaic_0001>
module attributes {stable_mosaic.version = 11 : i64} {
  func.func @kernel(%arg0: i32, %arg1: i32, %arg2: memref<1x8x32xf32, #tpu.memory_space<vmem>>, %arg3: memref<32x128xf32, #tpu.memory_space<vmem>>, %arg4: memref<32x256xf32, #tpu.memory_space<vmem>>, %arg5: memref<1x128xf32, #tpu.memory_space<vmem>>, %arg6: memref<1x256xf32, #tpu.memory_space<vmem>>, %arg7: memref<1x8x16xf32, #tpu.memory_space<vmem>>) attributes {dimension_semantics = [#tpu.dimension_semantics<parallel>, #tpu.dimension_semantics<arbitrary>], iteration_bounds = array<i64: 2, 1>, scalar_prefetch = 0 : i64, scratch_operands = 0 : i64, tpu.core_type = #tpu.core_type<tc>, window_params = [{transform_indices = @transform_0, window_bounds = array<i64: 1, 8, 32>}, {pipeline_mode = #tpu.pipeline_mode<synchronous>, transform_indices = @transform_1, window_bounds = array<i64: 32, 128>}, {pipeline_mode = #tpu.pipeline_mode<synchronous>, transform_indices = @transform_2, window_bounds = array<i64: 32, 256>}, {pipeline_mode = #tpu.pipeline_mode<synchronous>, transform_indices = @transform_3, window_bounds = array<i64: 1, 128>}, {pipeline_mode = #tpu.pipeline_mode<synchronous>, transform_indices = @transform_4, window_bounds = array<i64: 1, 256>}, {transform_indices = @transform_5, window_bounds = array<i64: 1, 8, 16>}]} {
    %c0 = arith.constant 0 : index
    %c0_0 = arith.constant 0 : index
    %c0_1 = arith.constant 0 : index
    %0 = vector.load %arg2[%c0, %c0_0, %c0_1] : memref<1x8x32xf32, #tpu.memory_space<vmem>>, vector<1x8x32xf32>
    %1 = vector.shape_cast %0 : vector<1x8x32xf32> to vector<8x32xf32>
    %c0_2 = arith.constant 0 : index
    %c0_3 = arith.constant 0 : index
    %2 = vector.load %arg4[%c0_2, %c0_3] : memref<32x256xf32, #tpu.memory_space<vmem>>, vector<32x256xf32>
    %cst = arith.constant dense<0.000000e+00> : vector<8x256xf32>
    %3 = tpu.matmul %1, %2, %cst {dimension_numbers = #tpu.dot_dimension_numbers<[1], [0], [0], [1], [0, 0, 1, 1], [], []>} : vector<8x32xf32>, vector<32x256xf32>, vector<8x256xf32> -> vector<8x256xf32>
    %c0_4 = arith.constant 0 : index
    %c0_5 = arith.constant 0 : index
    %4 = vector.load %arg6[%c0_4, %c0_5] : memref<1x256xf32, #tpu.memory_space<vmem>>, vector<1x256xf32>
    %5 = vector.broadcast %4 : vector<1x256xf32> to vector<8x256xf32>
    %6 = arith.addf %3, %5 : vector<8x256xf32>
    %7 = vector.shape_cast %6 : vector<8x256xf32> to vector<1x8x256xf32>
    %8 = vector.extract_strided_slice %7 {offsets = [0, 0, 0], sizes = [1, 8, 128], strides = [1, 1, 1]} : vector<1x8x256xf32> to vector<1x8x128xf32>
    %9 = vector.extract_strided_slice %7 {offsets = [0, 0, 128], sizes = [1, 8, 128], strides = [1, 1, 1]} : vector<1x8x256xf32> to vector<1x8x128xf32>
    %c0_6 = arith.constant 0 : index
    %c0_7 = arith.constant 0 : index
    %c0_8 = arith.constant 0 : index
    %10 = vector.load %arg2[%c0_6, %c0_7, %c0_8] : memref<1x8x32xf32, #tpu.memory_space<vmem>>, vector<1x8x32xf32>
    %11 = vector.shape_cast %10 : vector<1x8x32xf32> to vector<8x32xf32>
    %c0_9 = arith.constant 0 : index
    %c0_10 = arith.constant 0 : index
    %12 = vector.load %arg3[%c0_9, %c0_10] : memref<32x128xf32, #tpu.memory_space<vmem>>, vector<32x128xf32>
    %cst_11 = arith.constant dense<0.000000e+00> : vector<8x128xf32>
    %13 = tpu.matmul %11, %12, %cst_11 {dimension_numbers = #tpu.dot_dimension_numbers<[1], [0], [0], [1], [0, 0, 1, 1], [], []>} : vector<8x32xf32>, vector<32x128xf32>, vector<8x128xf32> -> vector<8x128xf32>
    %c0_12 = arith.constant 0 : index
    %c0_13 = arith.constant 0 : index
    %14 = vector.load %arg5[%c0_12, %c0_13] : memref<1x128xf32, #tpu.memory_space<vmem>>, vector<1x128xf32>
    %15 = vector.broadcast %14 : vector<1x128xf32> to vector<8x128xf32>
    %16 = arith.addf %13, %15 : vector<8x128xf32>
    %17 = vector.shape_cast %16 : vector<8x128xf32> to vector<1x8x128xf32>
    "tpu.trace_start"() <{level = 10 : i32, message = "bqd,bkd->bqk"}> : () -> ()
    %cst_14 = arith.constant dense<0.000000e+00> : vector<1x8x8xf32>
    %18 = tpu.matmul %17, %8, %cst_14 {dimension_numbers = #tpu.dot_dimension_numbers<[2], [2], [1], [1], [0, 0, 0, 1, 1, 1], [0], [0]>} : vector<1x8x128xf32>, vector<1x8x128xf32>, vector<1x8x8xf32> -> vector<1x8x8xf32>
    "tpu.trace_stop"() : () -> ()
    %cst_15 = arith.constant dense<0xFF800000> : vector<1x8xf32>
    %19 = vector.multi_reduction <maximumf>, %18, %cst_15 [2] : vector<1x8x8xf32> to vector<1x8xf32>
    %20 = vector.shape_cast %19 : vector<1x8xf32> to vector<1x8x1xf32>
    %21 = vector.broadcast %20 : vector<1x8x1xf32> to vector<1x8x8xf32>
    %22 = arith.subf %18, %21 : vector<1x8x8xf32>
    %23 = math.exp %22 : vector<1x8x8xf32>
    %cst_16 = arith.constant dense<0.000000e+00> : vector<1x8xf32>
    %24 = vector.multi_reduction <add>, %23, %cst_16 [2] : vector<1x8x8xf32> to vector<1x8xf32>
    %25 = vector.shape_cast %24 : vector<1x8xf32> to vector<1x8x1xf32>
    "tpu.trace_start"() <{level = 10 : i32, message = "bqk,bkd->bqd"}> : () -> ()
    %cst_17 = arith.constant dense<0.000000e+00> : vector<1x8x128xf32>
    %26 = tpu.matmul %23, %9, %cst_17 {dimension_numbers = #tpu.dot_dimension_numbers<[2], [1], [1], [2], [0, 0, 0, 1, 1, 2], [0], [0]>} : vector<1x8x8xf32>, vector<1x8x128xf32>, vector<1x8x128xf32> -> vector<1x8x128xf32>
    "tpu.trace_stop"() : () -> ()
    %cst_18 = arith.constant 1.000000e+00 : f32
    %27 = vector.broadcast %cst_18 : f32 to vector<1x8x1xf32>
    %28 = arith.divf %27, %25 : vector<1x8x1xf32>
    %29 = vector.broadcast %28 : vector<1x8x1xf32> to vector<1x8x128xf32>
    %30 = arith.mulf %26, %29 : vector<1x8x128xf32>
    %31 = vector.extract_strided_slice %30 {offsets = [0, 0, 0], sizes = [1, 8, 16], strides = [1, 1, 1]} : vector<1x8x128xf32> to vector<1x8x16xf32>
    %c0_19 = arith.constant 0 : index
    %c0_20 = arith.constant 0 : index
    %c0_21 = arith.constant 0 : index
    %32 = vector.load %arg7[%c0_19, %c0_20, %c0_21] : memref<1x8x16xf32, #tpu.memory_space<vmem>>, vector<1x8x16xf32>
    tpu.vector_store %arg7[%c0_19, %c0_20, %c0_21], %31 {strides = array<i32>} : memref<1x8x16xf32, #tpu.memory_space<vmem>>, vector<1x8x16xf32>,
    return
  }
  func.func @transform_0(%arg0: i32, %arg1: i32) -> (i32, i32, i32) {
    %c0_i32 = arith.constant 0 : i32
    %c0_i32_0 = arith.constant 0 : i32
    %c0_i32_1 = arith.constant 0 : i32
    return %arg0, %c0_i32, %c0_i32_0 : i32, i32, i32
  }
  func.func @transform_1(%arg0: i32, %arg1: i32) -> (i32, i32) {
    %c0_i32 = arith.constant 0 : i32
    %c0_i32_0 = arith.constant 0 : i32
    %c0_i32_1 = arith.constant 0 : i32
    return %c0_i32, %c0_i32_0 : i32, i32
  }
  func.func @transform_2(%arg0: i32, %arg1: i32) -> (i32, i32) {
    %c0_i32 = arith.constant 0 : i32
    %c0_i32_0 = arith.constant 0 : i32
    %c0_i32_1 = arith.constant 0 : i32
    return %c0_i32, %c0_i32_0 : i32, i32
  }
  func.func @transform_3(%arg0: i32, %arg1: i32) -> (i32, i32) {
    %c0_i32 = arith.constant 0 : i32
    %c0_i32_0 = arith.constant 0 : i32
    %c0_i32_1 = arith.constant 0 : i32
    return %c0_i32, %c0_i32_0 : i32, i32
  }
  func.func @transform_4(%arg0: i32, %arg1: i32) -> (i32, i32) {
    %c0_i32 = arith.constant 0 : i32
    %c0_i32_0 = arith.constant 0 : i32
    %c0_i32_1 = arith.constant 0 : i32
    return %c0_i32, %c0_i32_0 : i32, i32
  }
  func.func @transform_5(%arg0: i32, %arg1: i32) -> (i32, i32, i32) {
    %c0_i32 = arith.constant 0 : i32
    %c0_i32_0 = arith.constant 0 : i32
    return %arg0, %arg1, %c0_i32 : i32, i32, i32
  }
}

</mosaic_0001>

<llo_original>
// kernel: tpu_custom_call.1
$region0: #{tpu_custom_call.1}
  #allocation0 [shape = 'u32[]', space=smem, size = 0x4, offset = 0x4, fixed_abs, tag = 'smem constant byte address 0x4 - core index']
  #allocation1 [shape = 'u32[72,128]{1,0:T(1,128)}', space=vmem, size = 0x9000, scoped, tag = 'internal scratch']
  %s0 = inlined_call_operand.hbm [shape: f32[2,8,32], index: 0, kind: input, shape index: {}]
  %s1 = inlined_call_operand.hbm [shape: f32[32,128], index: 1, kind: input, shape index: {}]
  %s2 = inlined_call_operand.hbm [shape: f32[32,256], index: 2, kind: input, shape index: {}]
  %s3 = inlined_call_operand.vmem [shape: f32[1,128], index: 3, kind: input, shape index: {}]
  %s4 = inlined_call_operand.vmem [shape: f32[1,256], index: 4, kind: input, shape index: {}]
  %s5 = inlined_call_operand.hbm [shape: f32[2,8,16], index: 5, kind: output, shape index: {}]
  %s6 = sld [smem:[#allocation0]]
  $region65: #{tpu_custom_call.1} parent=0
    _
  %s8 = ssub.s32 1, %s6
  %s9 = scalar_select 0, %s8, %s6
  $region1: #{tpu_custom_call.1} parent=0
    #allocation2 [shape = 'u8[8192]{0}', space=vmem, size = 0x2000, scoped, tag = 'input window, operand 0']
    #allocation3 [shape = 's32[2]{0}', space=sflag, size = 0x8, scoped, tag = 'scoped memory for tpu_custom_call.1']
    #allocation4 [shape = 's32[2]{0}', space=sflag, size = 0x8, scoped, tag = 'scoped memory for tpu_custom_call.1']
    #allocation5 [shape = 'u8[16384]{0}', space=vmem, size = 0x4000, scoped, tag = 'input window, operand 1, single buffered']
    #allocation6 [shape = 's32[1]{0}', space=sflag, size = 0x4, scoped, tag = 'scoped memory for tpu_custom_call.1']
    #allocation7 [shape = 'u8[32768]{0}', space=vmem, size = 0x8000, scoped, tag = 'input window, operand 2, single buffered']
    #allocation8 [shape = 'u8[8192]{0}', space=vmem, size = 0x2000, scoped, tag = 'output window, operand 0']
    %10 = vsyncpa [#allocation3], 0
    %s11 = scalar_lea.sflag [#allocation3], 1
    %12 = vsyncpa %s11, 0
    %13 = vsyncpa [#allocation6], 0
    %14 = vsyncpa [#allocation4], 0
    %s15 = scalar_lea.sflag [#allocation4], 1
    %16 = vsyncpa %s15, 0
    loop: start=0, step=1, limit=4
    $region2: #{tpu_custom_call.1} parent=1 // loop_pre_header
      _
    $region3: #{tpu_custom_call.1} parent=1 // loop_header
      %s18 = sphi 0, %s22
      %p19 = scmp.ge.s32.totalorder %s18, 4
      %s25 = sphi 0, %s37
      %s26 = sphi 0, %s33
      %s27 = sphi 0, %s25
      %s28 = sphi 0, %s26
      %s29 = sphi 0, %s27
      %s30 = sphi 0, %s28
      %s40 = sphi 0, %s42
      %s43 = sphi 0, %s40
      %s44 = sphi 0, %s43
      %s60 = sphi 0, %s44
      %s64 = sphi 0, %s64
      %s66 = sphi 0, %s64
      %s67 = sphi 0, %s66
      %s81 = sphi 0, %s67
      %s85 = sphi 0, %s85
      %s87 = sphi 0, %s85
      %s88 = sphi 0, %s87
      %s102 = sphi 0, %s88
      %s106 = sphi 0, %s106
      %s108 = sphi 0, %s106
      %s109 = sphi 0, %s108
      %s123 = sphi 0, %s109
      %s127 = sphi 0, %s127
      %s129 = sphi 0, %s127
      %s130 = sphi 0, %s129
      %s144 = sphi 0, %s130
      %s152 = sphi 0, %s154
      %s155 = sphi 0, %s152
      %s156 = sphi 0, %s155
      %s172 = sphi 0, %s156
    $region4: #{tpu_custom_call.1} parent=1 // loop_header_branch
      %21 = sbr.rel (%p19) target = $region8
    $region5: #{tpu_custom_call.1} parent=1 // loop_body
      %s23 = ssub.s32 %s18, 1
      %s24 = ssub.s32 %s18, 2
      %s31 = sadd.s32 1, %s26
      %p32 = scmp.ge.s32.totalorder %s31, 1
      %s33 = scalar_select %p32, 0, %s31
      %s34 = sadd.s32 1, %s25
      %s35 = scalar_select %p32, %s34, %s25
      %p36 = scmp.ge.s32.totalorder %s35, 2
      %s37 = scalar_select %p36, 0, %s35
      %s38 = ssub.s32 %s25, %s37
      %p39 = scmp.eq.s32.totalorder %s38, 0
      %s41 = sadd.s32 %s40, 1
      %s42 = scalar_select %p39, %s40, %s41
      %p45 = pneg %p39
      %p46 = scmp.eq.s32.totalorder %s18, 1
      %p47 = por %p45, %p46
      %p48 = scmp.ne.s32.totalorder %s40, %s43
      %p49 = scmp.eq.s32.totalorder %s18, 0
      %p50 = por %p48, %p49
      %p51 = scmp.ne.s32.totalorder %s40, %s43
      %p52 = scmp.eq.s32.totalorder %s23, 1
      %p53 = por %p51, %p52
      %p54 = scmp.ne.s32.totalorder %s43, %s44
      %p55 = scmp.eq.s32.totalorder %s23, 0
      %p56 = por %p54, %p55
      %p57 = scmp.ne.s32.totalorder %s43, %s44
      %p58 = scmp.eq.s32.totalorder %s24, 1
      %p59 = por %p57, %p58
      %p61 = scmp.ne.s32.totalorder %s44, %s60
      %p62 = scmp.eq.s32.totalorder %s24, 0
      %p63 = por %p61, %p62
      %s65 = sadd.s32 %s64, 1
      %p68 = scmp.eq.s32.totalorder %s18, 1
      %p69 = scmp.ne.s32.totalorder %s64, %s66
      %p70 = scmp.eq.s32.totalorder %s18, 0
      %p71 = por %p69, %p70
      %p72 = scmp.ne.s32.totalorder %s64, %s66
      %p73 = scmp.eq.s32.totalorder %s23, 1
      %p74 = por %p72, %p73
      %p75 = scmp.ne.s32.totalorder %s66, %s67
      %p76 = scmp.eq.s32.totalorder %s23, 0
      %p77 = por %p75, %p76
      %p78 = scmp.ne.s32.totalorder %s66, %s67
      %p79 = scmp.eq.s32.totalorder %s24, 1
      %p80 = por %p78, %p79
      %p82 = scmp.ne.s32.totalorder %s67, %s81
      %p83 = scmp.eq.s32.totalorder %s24, 0
      %p84 = por %p82, %p83
      %s86 = sadd.s32 %s85, 1
      %p89 = scmp.eq.s32.totalorder %s18, 1
      %p90 = scmp.ne.s32.totalorder %s85, %s87
      %p91 = scmp.eq.s32.totalorder %s18, 0
      %p92 = por %p90, %p91
      %p93 = scmp.ne.s32.totalorder %s85, %s87
      %p94 = scmp.eq.s32.totalorder %s23, 1
      %p95 = por %p93, %p94
      %p96 = scmp.ne.s32.totalorder %s87, %s88
      %p97 = scmp.eq.s32.totalorder %s23, 0
      %p98 = por %p96, %p97
      %p99 = scmp.ne.s32.totalorder %s87, %s88
      %p100 = scmp.eq.s32.totalorder %s24, 1
      %p101 = por %p99, %p100
      %p103 = scmp.ne.s32.totalorder %s88, %s102
      %p104 = scmp.eq.s32.totalorder %s24, 0
      %p105 = por %p103, %p104
      %s107 = sadd.s32 %s106, 1
      %p110 = scmp.eq.s32.totalorder %s18, 1
      %p111 = scmp.ne.s32.totalorder %s106, %s108
      %p112 = scmp.eq.s32.totalorder %s18, 0
      %p113 = por %p111, %p112
      %p114 = scmp.ne.s32.totalorder %s106, %s108
      %p115 = scmp.eq.s32.totalorder %s23, 1
      %p116 = por %p114, %p115
      %p117 = scmp.ne.s32.totalorder %s108, %s109
      %p118 = scmp.eq.s32.totalorder %s23, 0
      %p119 = por %p117, %p118
      %p120 = scmp.ne.s32.totalorder %s108, %s109
      %p121 = scmp.eq.s32.totalorder %s24, 1
      %p122 = por %p120, %p121
      %p124 = scmp.ne.s32.totalorder %s109, %s123
      %p125 = scmp.eq.s32.totalorder %s24, 0
      %p126 = por %p124, %p125
      %s128 = sadd.s32 %s127, 1
      %p131 = scmp.eq.s32.totalorder %s18, 1
      %p132 = scmp.ne.s32.totalorder %s127, %s129
      %p133 = scmp.eq.s32.totalorder %s18, 0
      %p134 = por %p132, %p133
      %p135 = scmp.ne.s32.totalorder %s127, %s129
      %p136 = scmp.eq.s32.totalorder %s23, 1
      %p137 = por %p135, %p136
      %p138 = scmp.ne.s32.totalorder %s129, %s130
      %p139 = scmp.eq.s32.totalorder %s23, 0
      %p140 = por %p138, %p139
      %p141 = scmp.ne.s32.totalorder %s129, %s130
      %p142 = scmp.eq.s32.totalorder %s24, 1
      %p143 = por %p141, %p142
      %p145 = scmp.ne.s32.totalorder %s130, %s144
      %p146 = scmp.eq.s32.totalorder %s24, 0
      %p147 = por %p145, %p146
      %s148 = ssub.s32 %s25, %s37
      %s149 = ssub.s32 %s26, %s33
      %s150 = sor.u32 %s148, %s149
      %p151 = scmp.eq.s32.totalorder %s150, 0
      %s153 = sadd.s32 %s152, 1
      %s154 = scalar_select %p151, %s152, %s153
      %p157 = pneg %p151
      %p158 = scmp.eq.s32.totalorder %s18, 1
      %p159 = por %p157, %p158
      %p160 = scmp.ne.s32.totalorder %s152, %s155
      %p161 = scmp.eq.s32.totalorder %s18, 0
      %p162 = por %p160, %p161
      %p163 = scmp.ne.s32.totalorder %s152, %s155
      %p164 = scmp.eq.s32.totalorder %s23, 1
      %p165 = por %p163, %p164
      %p166 = scmp.ne.s32.totalorder %s155, %s156
      %p167 = scmp.eq.s32.totalorder %s23, 0
      %p168 = por %p166, %p167
      %p169 = scmp.ne.s32.totalorder %s155, %s156
      %p170 = scmp.eq.s32.totalorder %s24, 1
      %p171 = por %p169, %p170
      %p173 = scmp.ne.s32.totalorder %s156, %s172
      %p174 = scmp.eq.s32.totalorder %s24, 0
      %p175 = por %p173, %p174
      %p176 = scmp.le.s32.totalorder 1, %s18
      %p177 = scmp.lt.s32.totalorder %s18, 3
      %p178 = pnand %p176, %p177
      %p179 = pneg %p178
      // Predicated region
      $region9: #{tpu_custom_call.1} parent=5 // pred_check
        _
      $region10: #{tpu_custom_call.1} parent=5 // pred_check_branch
        %181 = sbr.rel (%p178) target = $region12
      $region11: #{tpu_custom_call.1} parent=5 // pred_region
        %s182 = ssub.s32 %s18, 1
        // Predicated region
        $region13: #{tpu_custom_call.1} parent=11 // pred_check
          %p183 = pneg %p77
        $region14: #{tpu_custom_call.1} parent=11 // pred_check_branch
          %185 = sbr.rel (%p183) target = $region16
        $region15: #{tpu_custom_call.1} parent=11 // pred_region
          %187 = vsyncadd [#allocation6], 0
          %s188 = sshll.u32 %s1, 4
          %s189 = int_to_ptr.hbm [resolvable:$true] %s188
          %s190 = sshll.u32 [#allocation5], 4
          %s191 = int_to_ptr.vmem [resolvable:$true] %s190
          %196 = dma.hbm_to_vmem [thread:$0]  %s189, 512, %s191, [#allocation6], 128, 128, 8
        $region16: #{tpu_custom_call.1} parent=11 // pred_fallthru
          _
        // Predicated region
        $region17: #{tpu_custom_call.1} parent=11 // pred_check
          %p197 = pneg %p98
        $region18: #{tpu_custom_call.1} parent=11 // pred_check_branch
          %199 = sbr.rel (%p197) target = $region20
        $region19: #{tpu_custom_call.1} parent=11 // pred_region
          %201 = vsyncadd [#allocation6], 0
          %s202 = sshll.u32 %s2, 4
          %s203 = int_to_ptr.hbm [resolvable:$true] %s202
          %s204 = sshll.u32 [#allocation7], 4
          %s205 = int_to_ptr.vmem [resolvable:$true] %s204
          %210 = dma.hbm_to_vmem [thread:$0]  %s203, 1024, %s205, [#allocation6], 256, 256, 16
        $region20: #{tpu_custom_call.1} parent=11 // pred_fallthru
          _
        // Predicated region
        $region21: #{tpu_custom_call.1} parent=11 // pred_check
          %p211 = pneg %p119
        $region22: #{tpu_custom_call.1} parent=11 // pred_check_branch
          %213 = sbr.rel (%p211) target = $region24
        $region23: #{tpu_custom_call.1} parent=11 // pred_region
          _
        $region24: #{tpu_custom_call.1} parent=11 // pred_fallthru
          _
        // Predicated region
        $region25: #{tpu_custom_call.1} parent=11 // pred_check
          %p214 = pneg %p140
        $region26: #{tpu_custom_call.1} parent=11 // pred_check_branch
          %216 = sbr.rel (%p214) target = $region28
        $region27: #{tpu_custom_call.1} parent=11 // pred_region
          _
        $region28: #{tpu_custom_call.1} parent=11 // pred_fallthru
          _
      $region12: #{tpu_custom_call.1} parent=5 // pred_fallthru
        _
      %p217 = scmp.lt.s32.totalorder %s18, 2
      // Predicated region
      $region29: #{tpu_custom_call.1} parent=5 // pred_check
        %p218 = pneg %p217
      $region30: #{tpu_custom_call.1} parent=5 // pred_check_branch
        %220 = sbr.rel (%p218) target = $region32
      $region31: #{tpu_custom_call.1} parent=5 // pred_region
        // Predicated region
        $region33: #{tpu_custom_call.1} parent=31 // pred_check
          %p221 = pneg %p50
        $region34: #{tpu_custom_call.1} parent=31 // pred_check_branch
          %223 = sbr.rel (%p221) target = $region36
        $region35: #{tpu_custom_call.1} parent=31 // pred_region
          %s224 = sand.u32 %s40, 1
          %s225 = scalar_lea.sflag [#allocation3], %s224
          %s226 = sand.u32 %s40, 1
          %s227 = smul.addr %s226, 8
          %s228 = scalar_lea.vmem [#allocation2], %s227
          %230 = vsyncadd %s225, 0
          %s231 = smul.addr %s25, 8
          %s232 = scalar_lea.hbm %s0, %s231
          %s234 = sshll.u32 %s232, 4
          %s235 = int_to_ptr.hbm [resolvable:$true] %s234
          %s236 = sshll.u32 %s228, 4
          %s237 = int_to_ptr.vmem [resolvable:$true] %s236
          %239 = dma.hbm_to_vmem [thread:$0]  %s235, 128, %s237, %s225
        $region36: #{tpu_custom_call.1} parent=31 // pred_fallthru
          _
      $region32: #{tpu_custom_call.1} parent=5 // pred_fallthru
        _
      %p240 = scmp.le.s32.totalorder 1, %s18
      %p241 = scmp.lt.s32.totalorder %s18, 3
      %p242 = pnand %p240, %p241
      %p243 = pneg %p242
      // Predicated region
      $region37: #{tpu_custom_call.1} parent=5 // pred_check
        _
      $region38: #{tpu_custom_call.1} parent=5 // pred_check_branch
        %245 = sbr.rel (%p242) target = $region40
      $region39: #{tpu_custom_call.1} parent=5 // pred_region
        %s246 = ssub.s32 %s18, 1
        %s247 = sand.u32 %s43, 1
        %s248 = scalar_lea.sflag [#allocation3], %s247
        %s249 = sand.u32 %s43, 1
        %s250 = smul.addr %s249, 8
        %s251 = scalar_lea.vmem [#allocation2], %s250
        // Predicated region
        $region41: #{tpu_custom_call.1} parent=39 // pred_check
          %p252 = pneg %p56
        $region42: #{tpu_custom_call.1} parent=39 // pred_check_branch
          %254 = sbr.rel (%p252) target = $region44
        $region43: #{tpu_custom_call.1} parent=39 // pred_region
          %256 = dma.done %s248, 128
        $region44: #{tpu_custom_call.1} parent=39 // pred_fallthru
          _
        // Predicated region
        $region45: #{tpu_custom_call.1} parent=39 // pred_check
          %p257 = pneg %p77
        $region46: #{tpu_custom_call.1} parent=39 // pred_check_branch
          %259 = sbr.rel (%p257) target = $region48
        $region47: #{tpu_custom_call.1} parent=39 // pred_region
          %261 = dma.done [#allocation6], 512
        $region48: #{tpu_custom_call.1} parent=39 // pred_fallthru
          _
        // Predicated region
        $region49: #{tpu_custom_call.1} parent=39 // pred_check
          %p262 = pneg %p98
        $region50: #{tpu_custom_call.1} parent=39 // pred_check_branch
          %264 = sbr.rel (%p262) target = $region52
        $region51: #{tpu_custom_call.1} parent=39 // pred_region
          %266 = dma.done [#allocation6], 1024
        $region52: #{tpu_custom_call.1} parent=39 // pred_fallthru
          _
        %s267 = sand.u32 %s43, 1
        %s268 = scalar_lea.sflag [#allocation3], %s267
        %s269 = sand.u32 %s43, 1
        %s270 = smul.addr %s269, 8
        %s271 = scalar_lea.vmem [#allocation2], %s270
        %p272 = pneg %p56
        %p273 = pneg %p53
        %p274 = pneg %p77
        %p275 = pneg %p74
        %p276 = pneg %p98
        %p277 = pneg %p95
        %p278 = pneg %p119
        %p279 = pneg %p116
        %p280 = pneg %p140
        %p281 = pneg %p137
        %p282 = pneg %p168
        %p283 = pneg %p165
        %s284 = sand.u32 %s155, 1
        %s285 = scalar_lea.sflag [#allocation4], %s284
        %s286 = sand.u32 %s155, 1
        %s287 = smul.addr %s286, 8
        %s288 = scalar_lea.vmem [#allocation8], %s287
        %v289 = vld [vmem:[%s251] sm:$0xff]
        %v290 = vld [vmem:[#allocation7] sm:$0xff]
        %v291 = vld [vmem:[#allocation7 + $0x8] sm:$0xff]
        %v292 = vld [vmem:[#allocation7 + $0x10] sm:$0xff]
        %v293 = vld [vmem:[#allocation7 + $0x18] sm:$0xff]
        %v294 = vld [vmem:[#allocation7 + $0x20] sm:$0xff]
        %v295 = vld [vmem:[#allocation7 + $0x28] sm:$0xff]
        %v296 = vld [vmem:[#allocation7 + $0x30] sm:$0xff]
        %v297 = vld [vmem:[#allocation7 + $0x38] sm:$0xff]
        %v298 = vld [vmem:[%s4] sm:$0x3]
        %v300 = vperm.slane %v298, 0
        %v301 = vperm.slane %v298, 1
        %vm304 = vcmask 261120
        %v306 = vsel %vm304, %v289, 0
        %308 = vmatpush.msra.mxu0 0.0
        %309 = vmatpush.msra.mxu0 0.0
        %310 = vmatpush.msra.mxu0 0.0
        %311 = vmatpush.msra.mxu0 0.0
        %312 = vmatpush.msra.mxu0 0.0
        %313 = vmatpush.msra.mxu0 0.0
        %314 = vmatpush.msra.mxu0 0.0
        %315 = vmatpush.msra.mxu0 0.0
        %316 = vmatpush.msra.mxu0 0.0
        %317 = vmatpush.msra.mxu0 0.0
        %318 = vmatpush.msra.mxu0 0.0
        %319 = vmatpush.msra.mxu0 0.0
        %320 = vmatpush.msra.mxu0 %v296
        %321 = vmatpush.msra.mxu0 %v294
        %322 = vmatpush.msra.mxu0 %v292
        %323 = vmatpush.msra.mxu0 %v290
        %324 = vmatmul.f32.gmra.mxu0 %v306
        %v325 = vpop.f32.mrf.mxu0
        %v326 = vadd.f32 %v300, %v325
        %327 = vdwg.mxu0
        %328 = vmatpush.msra.mxu0 0.0
        %329 = vmatpush.msra.mxu0 0.0
        %330 = vmatpush.msra.mxu0 0.0
        %331 = vmatpush.msra.mxu0 0.0
        %332 = vmatpush.msra.mxu0 0.0
        %333 = vmatpush.msra.mxu0 0.0
        %334 = vmatpush.msra.mxu0 0.0
        %335 = vmatpush.msra.mxu0 0.0
        %336 = vmatpush.msra.mxu0 0.0
        %337 = vmatpush.msra.mxu0 0.0
        %338 = vmatpush.msra.mxu0 0.0
        %339 = vmatpush.msra.mxu0 0.0
        %340 = vmatpush.msra.mxu0 %v297
        %341 = vmatpush.msra.mxu0 %v295
        %342 = vmatpush.msra.mxu0 %v293
        %343 = vmatpush.msra.mxu0 %v291
        %344 = vmatmul.f32.gmra.mxu0 %v306
        %v345 = vpop.f32.mrf.mxu0
        %v346 = vadd.f32 %v301, %v345
        %347 = vdwg.mxu0
        %v348 = vld [vmem:[#allocation5] sm:$0xff]
        %v349 = vld [vmem:[#allocation5 + $0x8] sm:$0xff]
        %v350 = vld [vmem:[#allocation5 + $0x10] sm:$0xff]
        %v351 = vld [vmem:[#allocation5 + $0x18] sm:$0xff]
        %v352 = vld [vmem:[%s3] sm:$0x1]
        %v354 = vperm.slane %v352, 0
        %356 = vmatpush.msra.mxu0 0.0
        %357 = vmatpush.msra.mxu0 0.0
        %358 = vmatpush.msra.mxu0 0.0
        %359 = vmatpush.msra.mxu0 0.0
        %360 = vmatpush.msra.mxu0 0.0
        %361 = vmatpush.msra.mxu0 0.0
        %362 = vmatpush.msra.mxu0 0.0
        %363 = vmatpush.msra.mxu0 0.0
        %364 = vmatpush.msra.mxu0 0.0
        %365 = vmatpush.msra.mxu0 0.0
        %366 = vmatpush.msra.mxu0 0.0
        %367 = vmatpush.msra.mxu0 0.0
        %368 = vmatpush.msra.mxu0 %v351
        %369 = vmatpush.msra.mxu0 %v350
        %370 = vmatpush.msra.mxu0 %v349
        %371 = vmatpush.msra.mxu0 %v348
        %372 = vmatmul.f32.gmra.mxu0 %v306
        %v373 = vpop.f32.mrf.mxu0
        %v374 = vadd.f32 %v354, %v373
        %375 = vdwg.mxu0
        %376 = vmatpush.xpose.msra.mxu0 0.0
        %377 = vmatpush.xpose.msra.mxu0 0.0
        %378 = vmatpush.xpose.msra.mxu0 0.0
        %379 = vmatpush.xpose.msra.mxu0 0.0
        %380 = vmatpush.xpose.msra.mxu0 0.0
        %381 = vmatpush.xpose.msra.mxu0 0.0
        %382 = vmatpush.xpose.msra.mxu0 0.0
        %383 = vmatpush.xpose.msra.mxu0 0.0
        %384 = vmatpush.xpose.msra.mxu0 0.0
        %385 = vmatpush.xpose.msra.mxu0 0.0
        %386 = vmatpush.xpose.msra.mxu0 0.0
        %387 = vmatpush.xpose.msra.mxu0 0.0
        %388 = vmatpush.xpose.msra.mxu0 0.0
        %389 = vmatpush.xpose.msra.mxu0 0.0
        %390 = vmatpush.xpose.msra.mxu0 0.0
        %391 = vmatpush.xpose.msra.mxu0 %v326
        %392 = vmatmul.f32.gmra.mxu0 %v374
        %v393 = vpop.f32.mrf.mxu0
        %v394 = vadd.f32 0.0, %v393
        %395 = vdwg.mxu0
        %vm396 = vcmask 64512
        %v397 = vsel %vm396, %v394, -inf
        %398 = vmax.xlane.f32.xlu0 %v397
        %v399 = vpop.xlane.xlu0 %398
        %v400 = vsub.f32 %v394, %v399
        %v401 = vmul.f32 %v400, 1.442695
        %v402 = vpow.pop %v401
        %v403 = vsel %vm396, %v402, 0.0
        %404 = vadd.xlane.f32.xlu0 %v403
        %v405 = vpop.xlane.xlu0 %404
        %v407 = vsel %vm396, %v402, 0
        %409 = vmatpush.msra.mxu0 0.0
        %410 = vmatpush.msra.mxu0 0.0
        %411 = vmatpush.msra.mxu0 0.0
        %412 = vmatpush.msra.mxu0 0.0
        %413 = vmatpush.msra.mxu0 0.0
        %414 = vmatpush.msra.mxu0 0.0
        %415 = vmatpush.msra.mxu0 0.0
        %416 = vmatpush.msra.mxu0 0.0
        %417 = vmatpush.msra.mxu0 0.0
        %418 = vmatpush.msra.mxu0 0.0
        %419 = vmatpush.msra.mxu0 0.0
        %420 = vmatpush.msra.mxu0 0.0
        %421 = vmatpush.msra.mxu0 0.0
        %422 = vmatpush.msra.mxu0 0.0
        %423 = vmatpush.msra.mxu0 0.0
        %424 = vmatpush.msra.mxu0 %v346
        %425 = vmatmul.f32.gmra.mxu0 %v407
        %v426 = vpop.f32.mrf.mxu0
        %v427 = vadd.f32 0.0, %v426
        %428 = vdwg.mxu0
        %v429 = vrcp.pop %v405
        %v430 = vmul.f32 %v405, %v429
        %v431 = vsub.f32 1.0, %v430
        %v432 = vmul.f32 %v429, %v431
        %v433 = vadd.f32 %v429, %v432
        %vm434 = vweird.f32 %v405
        %vm435 = vweird.f32 %v429
        %vm436 = vmor %vm434, %vm435
        %v437 = vsel %vm436, %v429, %v433
        %v438 = vand.u32 2147483647, %v405
        %vm439 = vcmp.eq.f32.partialorder %v438, 8.507059e+37
        %v440 = vand.u32 %v405, 2147483648
        %v441 = vor.u32 1.1754944e-38, %v440
        %v442 = vsel %vm439, %v441, %v437
        %v443 = vmul.f32 1.0, %v442
        %v444 = vmul.f32 %v427, %v443
        %vm445 = vcmask 130048
        %446 = vst.msk [vmem:[%s288] sm:$0xff] %vm445, %v444
        %s447 = sand.u32 %s155, 1
        %s448 = scalar_lea.sflag [#allocation4], %s447
        %s449 = sand.u32 %s155, 1
        %s450 = smul.addr %s449, 8
        %s451 = scalar_lea.vmem [#allocation8], %s450
        // Predicated region
        $region53: #{tpu_custom_call.1} parent=39 // pred_check
          %p452 = pneg %p165
        $region54: #{tpu_custom_call.1} parent=39 // pred_check_branch
          %454 = sbr.rel (%p452) target = $region56
        $region55: #{tpu_custom_call.1} parent=39 // pred_region
          %456 = vsyncadd %s448, 0
          %s457 = sadd.s32 %s28, %s27
          %s458 = smul.addr %s457, 8
          %s459 = scalar_lea.hbm %s5, %s458
          %s461 = sshll.u32 %s451, 4
          %s462 = int_to_ptr.vmem [resolvable:$true] %s461
          %s463 = sshll.u32 %s459, 4
          %s464 = int_to_ptr.hbm [resolvable:$true] %s463
          %466 = dma.vmem_to_hbm [thread:$0]  %s462, 128, %s464, %s448
        $region56: #{tpu_custom_call.1} parent=39 // pred_fallthru
          _
      $region40: #{tpu_custom_call.1} parent=5 // pred_fallthru
        _
      %p467 = scmp.le.s32.totalorder 2, %s18
      // Predicated region
      $region57: #{tpu_custom_call.1} parent=5 // pred_check
        %p468 = pneg %p467
      $region58: #{tpu_custom_call.1} parent=5 // pred_check_branch
        %470 = sbr.rel (%p468) target = $region60
      $region59: #{tpu_custom_call.1} parent=5 // pred_region
        %s471 = ssub.s32 %s18, 2
        // Predicated region
        $region61: #{tpu_custom_call.1} parent=59 // pred_check
          %p472 = pneg %p171
        $region62: #{tpu_custom_call.1} parent=59 // pred_check_branch
          %474 = sbr.rel (%p472) target = $region64
        $region63: #{tpu_custom_call.1} parent=59 // pred_region
          %s475 = sand.u32 %s156, 1
          %s476 = scalar_lea.sflag [#allocation4], %s475
          %s477 = sand.u32 %s156, 1
          %s478 = smul.addr %s477, 8
          %s479 = scalar_lea.vmem [#allocation8], %s478
          %481 = dma.done %s476, 128
        $region64: #{tpu_custom_call.1} parent=59 // pred_fallthru
          _
      $region60: #{tpu_custom_call.1} parent=5 // pred_fallthru
        _
    $region6: #{tpu_custom_call.1} parent=1 // loop_footer
      %s22 = sadd.s32 1, %s18
    $region7: #{tpu_custom_call.1} parent=1 // loop_footer_branch
      %17 = sbr.rel target = $region3
    $region8: #{tpu_custom_call.1} parent=1 // loop_exit
      _
    %482 = vsyncpa [#allocation3], 1
    %s483 = scalar_lea.sflag [#allocation3], 1
    %484 = vsyncpa %s483, 1
    %485 = vsyncpa [#allocation6], 1
    %486 = vsyncpa [#allocation4], 1
    %s487 = scalar_lea.sflag [#allocation4], 1
    %488 = vsyncpa %s487, 1

</llo_original>
